<compile_context>
chip_gen: v5e
topology: v5e:2x2
jax: 0.10.0
libtpu: 0.0.40
codegen_flags: <defaults>
</compile_context>

<pallas_src>
import jax
import jax.numpy as jnp
from jax.experimental import pallas as pl
from jax.experimental.pallas import tpu as pltpu

IN_DIM = 33
HIDDEN_DIM = 200
HIDDEN_PAD = 256          # 200 -> 256: MXU/lane aligned, zero-padded (exact)
NUM_CLASSES = 7
OUT_PAD = 8               # 7 -> 8: tiny f32 output stream (16x less writeback than 128-wide)
BN_EPS = 1e-5
MAX_TILE_B = 4096         # large batch tile: amortizes per-step pipeline overhead
TILE_ALIGN = 16           # bf16 sublane packing -> keep batch tiles multiples of 16


def _round_up(x, m):
    return ((x + m - 1) // m) * m


def _select_tile_b(B, tile_b=None):
    """Pick a batch tile: >=2 grid steps when possible, <= ~one tile of padding."""
    if tile_b is None:
        n_steps = max(2, pl.cdiv(B, MAX_TILE_B))   # >=2 steps keeps both v7x TCs busy
        tile_b = pl.cdiv(B, n_steps)
    tile_b = min(int(tile_b), MAX_TILE_B)
    tile_b = max(TILE_ALIGN, _round_up(tile_b, TILE_ALIGN))
    return tile_b


def _mlp_kernel(x_ref, w1_ref, b1_ref, w2_ref, b2_ref, w3_ref, b3_ref, out_ref):
    # x: (TILE_B, IN_DIM) bf16.  BatchNorm is already folded into w1/b1.
    x = x_ref[...]

    # Linear(33 -> 256) + ReLU   (K=33 is small; dominated by layer 2)
    h = jnp.dot(x, w1_ref[...], preferred_element_type=jnp.float32)
    h = jnp.maximum(h + b1_ref[...], 0.0)

    # Linear(256 -> 256) + ReLU  (dominant MXU work)
    h = jnp.dot(h.astype(jnp.bfloat16), w2_ref[...],
                preferred_element_type=jnp.float32)
    h = jnp.maximum(h + b2_ref[...], 0.0)

    # Regression head Linear(256 -> 8 padded); real outputs are cols [:7]
    out = jnp.dot(h.astype(jnp.bfloat16), w3_ref[...],
                  preferred_element_type=jnp.float32)
    out_ref[...] = (out + b3_ref[...]).astype(out_ref.dtype)


def mlp_regressor_forward(x, params, tile_b=None):
    """x: (B, IN_DIM) float32.  params: dict from init_params()[0]."""
    B = x.shape[0]
    x = x.astype(jnp.float32)

    # --- BatchNorm1d training-mode forward, folded exactly into layer 1 ------
    mean = jnp.mean(x, axis=0)                               # (IN_DIM,)
    var = jnp.mean(jnp.square(x - mean), axis=0)             # biased variance
    s = params["gamma"] * jax.lax.rsqrt(var + BN_EPS)        # (IN_DIM,)
    t = params["beta"] - mean * s                            # (IN_DIM,)
    w1_eff = (params["w1"] * s[:, None]).astype(jnp.bfloat16)        # (IN_DIM, HIDDEN_PAD)
    b1_eff = (params["b1"] + (t @ params["w1"])[None, :]).astype(jnp.float32)

    # --- batch tiling ---------------------------------------------------------
    tile_b = _select_tile_b(B, tile_b)
    B_pad = _round_up(B, tile_b)
    x_bf = x.astype(jnp.bfloat16)          # bf16 input stream (matmul was bf16 anyway)
    if B_pad != B:
        x_bf = jnp.pad(x_bf, ((0, B_pad - B), (0, 0)))
    grid = (B_pad // tile_b,)

    def full(shape):
        # Full-extent block, resident in VMEM across all grid steps.
        return pl.BlockSpec(shape, lambda i: (0, 0))

    weight_bytes = (IN_DIM * HIDDEN_PAD + HIDDEN_PAD * HIDDEN_PAD
                    + HIDDEN_PAD * OUT_PAD) * 2 + (2 * HIDDEN_PAD + OUT_PAD) * 4
    cost = pl.CostEstimate(
        flops=2 * B_pad * (IN_DIM * HIDDEN_PAD + HIDDEN_PAD * HIDDEN_PAD
                           + HIDDEN_PAD * OUT_PAD),
        transcendentals=0,
        bytes_accessed=B_pad * IN_DIM * 2 + weight_bytes + B_pad * OUT_PAD * 4,
    )

    out = pl.pallas_call(
        _mlp_kernel,
        out_shape=jax.ShapeDtypeStruct((B_pad, OUT_PAD), jnp.float32),
        grid=grid,
        in_specs=[
            pl.BlockSpec((tile_b, IN_DIM), lambda i: (i, 0)),   # x tile (pipelined, bf16)
            full((IN_DIM, HIDDEN_PAD)),                         # w1 (bf16, BN-folded)
            full((1, HIDDEN_PAD)),                              # b1 (f32)
            full((HIDDEN_PAD, HIDDEN_PAD)),                     # w2 (bf16)
            full((1, HIDDEN_PAD)),                              # b2 (f32)
            full((HIDDEN_PAD, OUT_PAD)),                        # w3 (bf16)
            full((1, OUT_PAD)),                                 # b3 (f32)
        ],
        out_specs=pl.BlockSpec((tile_b, OUT_PAD), lambda i: (i, 0)),
        compiler_params=pltpu.CompilerParams(
            dimension_semantics=("parallel",),
            vmem_limit_bytes=48 * 1024 * 1024,   # headroom under v7x's 64 MiB VMEM
        ),
        cost_estimate=cost,
    )(
        x_bf,
        w1_eff, b1_eff,
        params["w2"], params["b2"],
        params["w3"], params["b3"],
    )
    return out[:B, :NUM_CLASSES]


def init_params(key):
    """Returns (kernel_params, raw_f32_params).  Mimics PyTorch default init."""
    ks = jax.random.split(key, 6)

    def linear(kw, kb, fan_in, fan_out):
        bound = 1.0 / jnp.sqrt(fan_in)
        w = jax.random.uniform(kw, (fan_in, fan_out), jnp.float32, -bound, bound)
        b = jax.random.uniform(kb, (fan_out,), jnp.float32, -bound, bound)
        return w, b

    w1, b1 = linear(ks[0], ks[1], IN_DIM, HIDDEN_DIM)
    w2, b2 = linear(ks[2], ks[3], HIDDEN_DIM, HIDDEN_DIM)
    w3, b3 = linear(ks[4], ks[5], HIDDEN_DIM, NUM_CLASSES)
    gamma = jnp.ones((IN_DIM,), jnp.float32)     # BatchNorm affine weight
    beta = jnp.zeros((IN_DIM,), jnp.float32)     # BatchNorm affine bias

    raw = {"w1": w1, "b1": b1, "w2": w2, "b2": b2, "w3": w3, "b3": b3,
           "gamma": gamma, "beta": beta}

    def pad2(a, r, c):
        return jnp.pad(a, ((0, r - a.shape[0]), (0, c - a.shape[1])))

    def pad1(a, n):
        return jnp.pad(a, (0, n - a.shape[0]))[None, :]

    kernel_params = {
        "gamma": gamma,
        "beta": beta,
        # w1 stays f32: the per-batch BatchNorm fold happens in f32 in the wrapper.
        "w1": pad2(w1, IN_DIM, HIDDEN_PAD),
        "b1": pad1(b1, HIDDEN_PAD),
        "w2": pad2(w2, HIDDEN_PAD, HIDDEN_PAD).astype(jnp.bfloat16),
        "b2": pad1(b2, HIDDEN_PAD),
        "w3": pad2(w3, HIDDEN_PAD, OUT_PAD).astype(jnp.bfloat16),
        "b3": pad1(b3, OUT_PAD),
    }
    return kernel_params, raw


def _reference(x, p):
    """Pure-f32 JAX reference with the original (unpadded) module semantics."""
    mean = jnp.mean(x, axis=0, keepdims=True)
    var = jnp.mean((x - mean) ** 2, axis=0, keepdims=True)
    h = (x - mean) / jnp.sqrt(var + BN_EPS) * p["gamma"] + p["beta"]
    h = jnp.maximum(h @ p["w1"] + p["b1"], 0.0)
    h = jnp.maximum(h @ p["w2"] + p["b2"], 0.0)
    return h @ p["w3"] + p["b3"]


if __name__ == "__main__":
    key = jax.random.PRNGKey(0)
    k_x, k_p = jax.random.split(key)

    B = 40                      # not a multiple of the tile -> exercises padding
    x = jax.random.normal(k_x, (B, IN_DIM), jnp.float32)
    kernel_params, raw_params = init_params(k_p)
    ref = _reference(x, raw_params)

    fwd = jax.jit(mlp_regressor_forward, static_argnames=("tile_b",))

    # 1) auto tile selection (40 -> tile 32, padded 64, 2 grid steps)
    out_auto = jax.block_until_ready(fwd(x, kernel_params))
    # 2) small explicit tile (40 -> tile 16, padded 48, 3 grid steps)
    out_small = jax.block_until_ready(fwd(x, kernel_params, tile_b=16))

    for out in (out_auto, out_small):
        assert out.shape == (B, NUM_CLASSES)
        # bf16 matmul inputs with f32 accumulation -> slightly looser tolerance.
        assert jnp.allclose(out, ref, atol=5e-2, rtol=5e-2), (
            f"mismatch vs reference, max abs err = {jnp.max(jnp.abs(out - ref))}")

    print("KERNEL_OK")
</pallas_src>

<mosaic_0001>
module attributes {stable_mosaic.version = 11 : i64} {
  func.func @_mlp_kernel(%arg0: i32, %arg1: memref<32x33xbf16, #tpu.memory_space<vmem>>, %arg2: memref<33x256xbf16, #tpu.memory_space<vmem>>, %arg3: memref<1x256xf32, #tpu.memory_space<vmem>>, %arg4: memref<256x256xbf16, #tpu.memory_space<vmem>>, %arg5: memref<1x256xf32, #tpu.memory_space<vmem>>, %arg6: memref<256x8xbf16, #tpu.memory_space<vmem>>, %arg7: memref<1x8xf32, #tpu.memory_space<vmem>>, %arg8: memref<32x8xf32, #tpu.memory_space<vmem>>) attributes {dimension_semantics = [#tpu.dimension_semantics<parallel>], iteration_bounds = array<i64: 2>, scalar_prefetch = 0 : i64, scratch_operands = 0 : i64, tpu.core_type = #tpu.core_type<tc>, window_params = [{transform_indices = @transform_0, window_bounds = array<i64: 32, 33>}, {pipeline_mode = #tpu.pipeline_mode<synchronous>, transform_indices = @transform_1, window_bounds = array<i64: 33, 256>}, {pipeline_mode = #tpu.pipeline_mode<synchronous>, transform_indices = @transform_2, window_bounds = array<i64: 1, 256>}, {pipeline_mode = #tpu.pipeline_mode<synchronous>, transform_indices = @transform_3, window_bounds = array<i64: 256, 256>}, {pipeline_mode = #tpu.pipeline_mode<synchronous>, transform_indices = @transform_4, window_bounds = array<i64: 1, 256>}, {pipeline_mode = #tpu.pipeline_mode<synchronous>, transform_indices = @transform_5, window_bounds = array<i64: 256, 8>}, {pipeline_mode = #tpu.pipeline_mode<synchronous>, transform_indices = @transform_6, window_bounds = array<i64: 1, 8>}, {transform_indices = @transform_7, window_bounds = array<i64: 32, 8>}]} {
    %c0 = arith.constant 0 : index
    %c0_0 = arith.constant 0 : index
    %0 = vector.load %arg1[%c0, %c0_0] : memref<32x33xbf16, #tpu.memory_space<vmem>>, vector<32x33xbf16>
    %c0_1 = arith.constant 0 : index
    %c0_2 = arith.constant 0 : index
    %1 = vector.load %arg2[%c0_1, %c0_2] : memref<33x256xbf16, #tpu.memory_space<vmem>>, vector<33x256xbf16>
    %cst = arith.constant dense<0.000000e+00> : vector<32x256xf32>
    %2 = tpu.matmul %0, %1, %cst {dimension_numbers = #tpu.dot_dimension_numbers<[1], [0], [0], [1], [0, 0, 1, 1], [], []>} : vector<32x33xbf16>, vector<33x256xbf16>, vector<32x256xf32> -> vector<32x256xf32>
    %c0_3 = arith.constant 0 : index
    %c0_4 = arith.constant 0 : index
    %3 = vector.load %arg3[%c0_3, %c0_4] : memref<1x256xf32, #tpu.memory_space<vmem>>, vector<1x256xf32>
    %4 = vector.broadcast %3 : vector<1x256xf32> to vector<32x256xf32>
    %5 = arith.addf %2, %4 : vector<32x256xf32>
    %cst_5 = arith.constant 0.000000e+00 : f32
    %6 = vector.broadcast %cst_5 : f32 to vector<32x256xf32>
    %7 = arith.maximumf %5, %6 : vector<32x256xf32>
    %8 = arith.truncf %7 : vector<32x256xf32> to vector<32x256xbf16>
    %c0_6 = arith.constant 0 : index
    %c0_7 = arith.constant 0 : index
    %9 = vector.load %arg4[%c0_6, %c0_7] : memref<256x256xbf16, #tpu.memory_space<vmem>>, vector<256x256xbf16>
    %cst_8 = arith.constant dense<0.000000e+00> : vector<32x256xf32>
    %10 = tpu.matmul %8, %9, %cst_8 {dimension_numbers = #tpu.dot_dimension_numbers<[1], [0], [0], [1], [0, 0, 1, 1], [], []>} : vector<32x256xbf16>, vector<256x256xbf16>, vector<32x256xf32> -> vector<32x256xf32>
    %c0_9 = arith.constant 0 : index
    %c0_10 = arith.constant 0 : index
    %11 = vector.load %arg5[%c0_9, %c0_10] : memref<1x256xf32, #tpu.memory_space<vmem>>, vector<1x256xf32>
    %12 = vector.broadcast %11 : vector<1x256xf32> to vector<32x256xf32>
    %13 = arith.addf %10, %12 : vector<32x256xf32>
    %cst_11 = arith.constant 0.000000e+00 : f32
    %14 = vector.broadcast %cst_11 : f32 to vector<32x256xf32>
    %15 = arith.maximumf %13, %14 : vector<32x256xf32>
    %16 = arith.truncf %15 : vector<32x256xf32> to vector<32x256xbf16>
    %c0_12 = arith.constant 0 : index
    %c0_13 = arith.constant 0 : index
    %17 = vector.load %arg6[%c0_12, %c0_13] : memref<256x8xbf16, #tpu.memory_space<vmem>>, vector<256x8xbf16>
    %cst_14 = arith.constant dense<0.000000e+00> : vector<32x8xf32>
    %18 = tpu.matmul %16, %17, %cst_14 {dimension_numbers = #tpu.dot_dimension_numbers<[1], [0], [0], [1], [0, 0, 1, 1], [], []>} : vector<32x256xbf16>, vector<256x8xbf16>, vector<32x8xf32> -> vector<32x8xf32>
    %c0_15 = arith.constant 0 : index
    %c0_16 = arith.constant 0 : index
    %19 = vector.load %arg7[%c0_15, %c0_16] : memref<1x8xf32, #tpu.memory_space<vmem>>, vector<1x8xf32>
    %20 = vector.broadcast %19 : vector<1x8xf32> to vector<32x8xf32>
    %21 = arith.addf %18, %20 : vector<32x8xf32>
    %c0_17 = arith.constant 0 : index
    %c0_18 = arith.constant 0 : index
    %22 = vector.load %arg8[%c0_17, %c0_18] : memref<32x8xf32, #tpu.memory_space<vmem>>, vector<32x8xf32>
    tpu.vector_store %arg8[%c0_17, %c0_18], %21 {strides = array<i32>} : memref<32x8xf32, #tpu.memory_space<vmem>>, vector<32x8xf32>,
    return
  }
  func.func @transform_0(%arg0: i32) -> (i32, i32) {
    %c0_i32 = arith.constant 0 : i32
    %c0_i32_0 = arith.constant 0 : i32
    return %arg0, %c0_i32 : i32, i32
  }
  func.func @transform_1(%arg0: i32) -> (i32, i32) {
    %c0_i32 = arith.constant 0 : i32
    %c0_i32_0 = arith.constant 0 : i32
    %c0_i32_1 = arith.constant 0 : i32
    return %c0_i32, %c0_i32_0 : i32, i32
  }
  func.func @transform_2(%arg0: i32) -> (i32, i32) {
    %c0_i32 = arith.constant 0 : i32
    %c0_i32_0 = arith.constant 0 : i32
    %c0_i32_1 = arith.constant 0 : i32
    return %c0_i32, %c0_i32_0 : i32, i32
  }
  func.func @transform_3(%arg0: i32) -> (i32, i32) {
    %c0_i32 = arith.constant 0 : i32
    %c0_i32_0 = arith.constant 0 : i32
    %c0_i32_1 = arith.constant 0 : i32
    return %c0_i32, %c0_i32_0 : i32, i32
  }
  func.func @transform_4(%arg0: i32) -> (i32, i32) {
    %c0_i32 = arith.constant 0 : i32
    %c0_i32_0 = arith.constant 0 : i32
    %c0_i32_1 = arith.constant 0 : i32
    return %c0_i32, %c0_i32_0 : i32, i32
  }
  func.func @transform_5(%arg0: i32) -> (i32, i32) {
    %c0_i32 = arith.constant 0 : i32
    %c0_i32_0 = arith.constant 0 : i32
    %c0_i32_1 = arith.constant 0 : i32
    return %c0_i32, %c0_i32_0 : i32, i32
  }
  func.func @transform_6(%arg0: i32) -> (i32, i32) {
    %c0_i32 = arith.constant 0 : i32
    %c0_i32_0 = arith.constant 0 : i32
    %c0_i32_1 = arith.constant 0 : i32
    return %c0_i32, %c0_i32_0 : i32, i32
  }
  func.func @transform_7(%arg0: i32) -> (i32, i32) {
    %c0_i32 = arith.constant 0 : i32
    %c0_i32_0 = arith.constant 0 : i32
    return %arg0, %c0_i32 : i32, i32
  }
}

</mosaic_0001>

<llo_original>
// kernel: mlp_regressor_forward.1
$region0: #{mlp_regressor_forward.1}
  #allocation0 [shape = 'u32[]', space=smem, size = 0x4, offset = 0x4, fixed_abs, tag = 'smem constant byte address 0x4 - core index']
  #allocation1 [shape = 'u32[72,128]{1,0:T(1,128)}', space=vmem, size = 0x9000, scoped, tag = 'internal scratch']
  %s0 = inlined_call_operand.vmem [shape: bf16[64,33], index: 0, kind: input, shape index: {}]
  %s1 = inlined_call_operand.vmem [shape: bf16[33,256], index: 1, kind: input, shape index: {}]
  %s2 = inlined_call_operand.vmem [shape: f32[1,256], index: 2, kind: input, shape index: {}]
  %s3 = inlined_call_operand.vmem [shape: bf16[256,256], index: 3, kind: input, shape index: {}]
  %s4 = inlined_call_operand.vmem [shape: f32[1,256], index: 4, kind: input, shape index: {}]
  %s5 = inlined_call_operand.vmem [shape: bf16[256,8], index: 5, kind: input, shape index: {}]
  %s6 = inlined_call_operand.vmem [shape: f32[1,8], index: 6, kind: input, shape index: {}]
  %s7 = inlined_call_operand.vmem [shape: f32[64,8], index: 7, kind: output, shape index: {}]
  %s8 = sld [smem:[#allocation0]]
  $region61: #{mlp_regressor_forward.1} parent=0
    _
  %s10 = ssub.s32 1, %s8
  %s11 = scalar_select 0, %s10, %s8
  loop: start=0, step=1, limit=4
  $region2: #{mlp_regressor_forward.1} parent=0 // loop_pre_header
    _
  $region3: #{mlp_regressor_forward.1} parent=0 // loop_header
    %s13 = sphi 0, %s17
    %p14 = scmp.ge.s32.totalorder %s13, 4
    %s23 = sphi 0, %s25
    %s26 = sphi 0, %s23
    %s27 = sphi 0, %s26
    %s43 = sphi 0, %s27
    %s47 = sphi 0, %s47
    %s49 = sphi 0, %s47
    %s50 = sphi 0, %s49
    %s64 = sphi 0, %s50
    %s68 = sphi 0, %s68
    %s70 = sphi 0, %s68
    %s71 = sphi 0, %s70
    %s85 = sphi 0, %s71
    %s89 = sphi 0, %s89
    %s91 = sphi 0, %s89
    %s92 = sphi 0, %s91
    %s106 = sphi 0, %s92
    %s110 = sphi 0, %s110
    %s112 = sphi 0, %s110
    %s113 = sphi 0, %s112
    %s127 = sphi 0, %s113
    %s131 = sphi 0, %s131
    %s133 = sphi 0, %s131
    %s134 = sphi 0, %s133
    %s148 = sphi 0, %s134
    %s152 = sphi 0, %s152
    %s154 = sphi 0, %s152
    %s155 = sphi 0, %s154
    %s169 = sphi 0, %s155
    %s175 = sphi 0, %s177
    %s178 = sphi 0, %s175
    %s179 = sphi 0, %s178
    %s195 = sphi 0, %s179
  $region4: #{mlp_regressor_forward.1} parent=0 // loop_header_branch
    %16 = sbr.rel (%p14) target = $region8
  $region5: #{mlp_regressor_forward.1} parent=0 // loop_body
    %s18 = ssub.s32 %s13, 1
    %s19 = ssub.s32 %s13, 2
    %s20 = sadd.s32 %s13, 1
    %s21 = ssub.s32 %s13, %s20
    %p22 = scmp.eq.s32.totalorder %s21, 0
    %s24 = sadd.s32 %s23, 1
    %s25 = scalar_select %p22, %s23, %s24
    %p28 = pneg %p22
    %p29 = scmp.eq.s32.totalorder %s13, 1
    %p30 = por %p28, %p29
    %p31 = scmp.ne.s32.totalorder %s23, %s26
    %p32 = scmp.eq.s32.totalorder %s13, 0
    %p33 = por %p31, %p32
    %p34 = scmp.ne.s32.totalorder %s23, %s26
    %p35 = scmp.eq.s32.totalorder %s18, 1
    %p36 = por %p34, %p35
    %p37 = scmp.ne.s32.totalorder %s26, %s27
    %p38 = scmp.eq.s32.totalorder %s18, 0
    %p39 = por %p37, %p38
    %p40 = scmp.ne.s32.totalorder %s26, %s27
    %p41 = scmp.eq.s32.totalorder %s19, 1
    %p42 = por %p40, %p41
    %p44 = scmp.ne.s32.totalorder %s27, %s43
    %p45 = scmp.eq.s32.totalorder %s19, 0
    %p46 = por %p44, %p45
    %s48 = sadd.s32 %s47, 1
    %p51 = scmp.eq.s32.totalorder %s13, 1
    %p52 = scmp.ne.s32.totalorder %s47, %s49
    %p53 = scmp.eq.s32.totalorder %s13, 0
    %p54 = por %p52, %p53
    %p55 = scmp.ne.s32.totalorder %s47, %s49
    %p56 = scmp.eq.s32.totalorder %s18, 1
    %p57 = por %p55, %p56
    %p58 = scmp.ne.s32.totalorder %s49, %s50
    %p59 = scmp.eq.s32.totalorder %s18, 0
    %p60 = por %p58, %p59
    %p61 = scmp.ne.s32.totalorder %s49, %s50
    %p62 = scmp.eq.s32.totalorder %s19, 1
    %p63 = por %p61, %p62
    %p65 = scmp.ne.s32.totalorder %s50, %s64
    %p66 = scmp.eq.s32.totalorder %s19, 0
    %p67 = por %p65, %p66
    %s69 = sadd.s32 %s68, 1
    %p72 = scmp.eq.s32.totalorder %s13, 1
    %p73 = scmp.ne.s32.totalorder %s68, %s70
    %p74 = scmp.eq.s32.totalorder %s13, 0
    %p75 = por %p73, %p74
    %p76 = scmp.ne.s32.totalorder %s68, %s70
    %p77 = scmp.eq.s32.totalorder %s18, 1
    %p78 = por %p76, %p77
    %p79 = scmp.ne.s32.totalorder %s70, %s71
    %p80 = scmp.eq.s32.totalorder %s18, 0
    %p81 = por %p79, %p80
    %p82 = scmp.ne.s32.totalorder %s70, %s71
    %p83 = scmp.eq.s32.totalorder %s19, 1
    %p84 = por %p82, %p83
    %p86 = scmp.ne.s32.totalorder %s71, %s85
    %p87 = scmp.eq.s32.totalorder %s19, 0
    %p88 = por %p86, %p87
    %s90 = sadd.s32 %s89, 1
    %p93 = scmp.eq.s32.totalorder %s13, 1
    %p94 = scmp.ne.s32.totalorder %s89, %s91
    %p95 = scmp.eq.s32.totalorder %s13, 0
    %p96 = por %p94, %p95
    %p97 = scmp.ne.s32.totalorder %s89, %s91
    %p98 = scmp.eq.s32.totalorder %s18, 1
    %p99 = por %p97, %p98
    %p100 = scmp.ne.s32.totalorder %s91, %s92
    %p101 = scmp.eq.s32.totalorder %s18, 0
    %p102 = por %p100, %p101
    %p103 = scmp.ne.s32.totalorder %s91, %s92
    %p104 = scmp.eq.s32.totalorder %s19, 1
    %p105 = por %p103, %p104
    %p107 = scmp.ne.s32.totalorder %s92, %s106
    %p108 = scmp.eq.s32.totalorder %s19, 0
    %p109 = por %p107, %p108
    %s111 = sadd.s32 %s110, 1
    %p114 = scmp.eq.s32.totalorder %s13, 1
    %p115 = scmp.ne.s32.totalorder %s110, %s112
    %p116 = scmp.eq.s32.totalorder %s13, 0
    %p117 = por %p115, %p116
    %p118 = scmp.ne.s32.totalorder %s110, %s112
    %p119 = scmp.eq.s32.totalorder %s18, 1
    %p120 = por %p118, %p119
    %p121 = scmp.ne.s32.totalorder %s112, %s113
    %p122 = scmp.eq.s32.totalorder %s18, 0
    %p123 = por %p121, %p122
    %p124 = scmp.ne.s32.totalorder %s112, %s113
    %p125 = scmp.eq.s32.totalorder %s19, 1
    %p126 = por %p124, %p125
    %p128 = scmp.ne.s32.totalorder %s113, %s127
    %p129 = scmp.eq.s32.totalorder %s19, 0
    %p130 = por %p128, %p129
    %s132 = sadd.s32 %s131, 1
    %p135 = scmp.eq.s32.totalorder %s13, 1
    %p136 = scmp.ne.s32.totalorder %s131, %s133
    %p137 = scmp.eq.s32.totalorder %s13, 0
    %p138 = por %p136, %p137
    %p139 = scmp.ne.s32.totalorder %s131, %s133
    %p140 = scmp.eq.s32.totalorder %s18, 1
    %p141 = por %p139, %p140
    %p142 = scmp.ne.s32.totalorder %s133, %s134
    %p143 = scmp.eq.s32.totalorder %s18, 0
    %p144 = por %p142, %p143
    %p145 = scmp.ne.s32.totalorder %s133, %s134
    %p146 = scmp.eq.s32.totalorder %s19, 1
    %p147 = por %p145, %p146
    %p149 = scmp.ne.s32.totalorder %s134, %s148
    %p150 = scmp.eq.s32.totalorder %s19, 0
    %p151 = por %p149, %p150
    %s153 = sadd.s32 %s152, 1
    %p156 = scmp.eq.s32.totalorder %s13, 1
    %p157 = scmp.ne.s32.totalorder %s152, %s154
    %p158 = scmp.eq.s32.totalorder %s13, 0
    %p159 = por %p157, %p158
    %p160 = scmp.ne.s32.totalorder %s152, %s154
    %p161 = scmp.eq.s32.totalorder %s18, 1
    %p162 = por %p160, %p161
    %p163 = scmp.ne.s32.totalorder %s154, %s155
    %p164 = scmp.eq.s32.totalorder %s18, 0
    %p165 = por %p163, %p164
    %p166 = scmp.ne.s32.totalorder %s154, %s155
    %p167 = scmp.eq.s32.totalorder %s19, 1
    %p168 = por %p166, %p167
    %p170 = scmp.ne.s32.totalorder %s155, %s169
    %p171 = scmp.eq.s32.totalorder %s19, 0
    %p172 = por %p170, %p171
    %s173 = ssub.s32 %s13, %s20
    %p174 = scmp.eq.s32.totalorder %s173, 0
    %s176 = sadd.s32 %s175, 1
    %s177 = scalar_select %p174, %s175, %s176
    %p180 = pneg %p174
    %p181 = scmp.eq.s32.totalorder %s13, 1
    %p182 = por %p180, %p181
    %p183 = scmp.ne.s32.totalorder %s175, %s178
    %p184 = scmp.eq.s32.totalorder %s13, 0
    %p185 = por %p183, %p184
    %p186 = scmp.ne.s32.totalorder %s175, %s178
    %p187 = scmp.eq.s32.totalorder %s18, 1
    %p188 = por %p186, %p187
    %p189 = scmp.ne.s32.totalorder %s178, %s179
    %p190 = scmp.eq.s32.totalorder %s18, 0
    %p191 = por %p189, %p190
    %p192 = scmp.ne.s32.totalorder %s178, %s179
    %p193 = scmp.eq.s32.totalorder %s19, 1
    %p194 = por %p192, %p193
    %p196 = scmp.ne.s32.totalorder %s179, %s195
    %p197 = scmp.eq.s32.totalorder %s19, 0
    %p198 = por %p196, %p197
    %p199 = scmp.le.s32.totalorder 1, %s13
    %p200 = scmp.lt.s32.totalorder %s13, 3
    %p201 = pnand %p199, %p200
    %p202 = pneg %p201
    // Predicated region
    $region9: #{mlp_regressor_forward.1} parent=5 // pred_check
      _
    $region10: #{mlp_regressor_forward.1} parent=5 // pred_check_branch
      %204 = sbr.rel (%p201) target = $region12
    $region11: #{mlp_regressor_forward.1} parent=5 // pred_region
      %s205 = ssub.s32 %s13, 1
      // Predicated region
      $region13: #{mlp_regressor_forward.1} parent=11 // pred_check
        %p206 = pneg %p60
      $region14: #{mlp_regressor_forward.1} parent=11 // pred_check_branch
        %208 = sbr.rel (%p206) target = $region16
      $region15: #{mlp_regressor_forward.1} parent=11 // pred_region
        _
      $region16: #{mlp_regressor_forward.1} parent=11 // pred_fallthru
        _
      // Predicated region
      $region17: #{mlp_regressor_forward.1} parent=11 // pred_check
        %p209 = pneg %p81
      $region18: #{mlp_regressor_forward.1} parent=11 // pred_check_branch
        %211 = sbr.rel (%p209) target = $region20
      $region19: #{mlp_regressor_forward.1} parent=11 // pred_region
        _
      $region20: #{mlp_regressor_forward.1} parent=11 // pred_fallthru
        _
      // Predicated region
      $region21: #{mlp_regressor_forward.1} parent=11 // pred_check
        %p212 = pneg %p102
      $region22: #{mlp_regressor_forward.1} parent=11 // pred_check_branch
        %214 = sbr.rel (%p212) target = $region24
      $region23: #{mlp_regressor_forward.1} parent=11 // pred_region
        _
      $region24: #{mlp_regressor_forward.1} parent=11 // pred_fallthru
        _
      // Predicated region
      $region25: #{mlp_regressor_forward.1} parent=11 // pred_check
        %p215 = pneg %p123
      $region26: #{mlp_regressor_forward.1} parent=11 // pred_check_branch
        %217 = sbr.rel (%p215) target = $region28
      $region27: #{mlp_regressor_forward.1} parent=11 // pred_region
        _
      $region28: #{mlp_regressor_forward.1} parent=11 // pred_fallthru
        _
      // Predicated region
      $region29: #{mlp_regressor_forward.1} parent=11 // pred_check
        %p218 = pneg %p144
      $region30: #{mlp_regressor_forward.1} parent=11 // pred_check_branch
        %220 = sbr.rel (%p218) target = $region32
      $region31: #{mlp_regressor_forward.1} parent=11 // pred_region
        _
      $region32: #{mlp_regressor_forward.1} parent=11 // pred_fallthru
        _
      // Predicated region
      $region33: #{mlp_regressor_forward.1} parent=11 // pred_check
        %p221 = pneg %p165
      $region34: #{mlp_regressor_forward.1} parent=11 // pred_check_branch
        %223 = sbr.rel (%p221) target = $region36
      $region35: #{mlp_regressor_forward.1} parent=11 // pred_region
        _
      $region36: #{mlp_regressor_forward.1} parent=11 // pred_fallthru
        _
    $region12: #{mlp_regressor_forward.1} parent=5 // pred_fallthru
      _
    %p224 = scmp.lt.s32.totalorder %s13, 2
    // Predicated region
    $region37: #{mlp_regressor_forward.1} parent=5 // pred_check
      %p225 = pneg %p224
    $region38: #{mlp_regressor_forward.1} parent=5 // pred_check_branch
      %227 = sbr.rel (%p225) target = $region40
    $region39: #{mlp_regressor_forward.1} parent=5 // pred_region
      // Predicated region
      $region41: #{mlp_regressor_forward.1} parent=39 // pred_check
        %p228 = pneg %p33
      $region42: #{mlp_regressor_forward.1} parent=39 // pred_check_branch
        %230 = sbr.rel (%p228) target = $region44
      $region43: #{mlp_regressor_forward.1} parent=39 // pred_region
        %s231 = smul.u32 4, %s13
        %p232 = scmp.lt.s32.totalorder %s231, 7
        %s233 = scalar_select %p232, %s231, 7
        %s234 = smul.addr %s233, 4
        %s235 = scalar_lea.vmem %s0, %s234
        %s236 = smul.u32 4, %s13
      $region44: #{mlp_regressor_forward.1} parent=39 // pred_fallthru
        _
    $region40: #{mlp_regressor_forward.1} parent=5 // pred_fallthru
      _
    %p237 = scmp.le.s32.totalorder 1, %s13
    %p238 = scmp.lt.s32.totalorder %s13, 3
    %p239 = pnand %p237, %p238
    %p240 = pneg %p239
    // Predicated region
    $region45: #{mlp_regressor_forward.1} parent=5 // pred_check
      _
    $region46: #{mlp_regressor_forward.1} parent=5 // pred_check_branch
      %242 = sbr.rel (%p239) target = $region48
    $region47: #{mlp_regressor_forward.1} parent=5 // pred_region
      %s243 = ssub.s32 %s13, 1
      %s244 = smul.u32 4, %s18
      %p245 = scmp.lt.s32.totalorder %s244, 7
      %s246 = scalar_select %p245, %s244, 7
      %s247 = smul.addr %s246, 4
      %s248 = scalar_lea.vmem %s0, %s247
      %p249 = pneg %p39
      %p250 = pneg %p36
      %p251 = pneg %p60
      %p252 = pneg %p57
      %p253 = pneg %p81
      %p254 = pneg %p78
      %p255 = pneg %p102
      %p256 = pneg %p99
      %p257 = pneg %p123
      %p258 = pneg %p120
      %p259 = pneg %p144
      %p260 = pneg %p141
      %p261 = pneg %p165
      %p262 = pneg %p162
      %p263 = pneg %p191
      %p264 = pneg %p188
      %s265 = smul.u32 4, %s18
      %p266 = scmp.lt.s32.totalorder %s265, 7
      %s267 = scalar_select %p266, %s265, 7
      %s268 = smul.addr %s267, 8
      %s269 = scalar_lea.vmem %s7, %s268
      %s270 = smul.u32 4, %s18
      %p271 = scmp.lt.s32.totalorder %s270, 7
      %s272 = scalar_select %p271, %s270, 7
      %s273 = smul.addr %s272, 4
      %s274 = scalar_lea.vmem %s0, %s273
      %s275 = smul.u32 4, %s18
      %s276 = smul.u32 4, %s18
      %p277 = scmp.lt.s32.totalorder %s276, 7
      %s278 = scalar_select %p277, %s276, 7
      %s279 = smul.addr %s278, 8
      %s280 = scalar_lea.vmem %s7, %s279
      %s281 = smul.u32 4, %s18
      %v283 = vld [vmem:[%s274] sm:$0xf]
      %v284 = vld [vmem:[%s274 + $0x4] sm:$0xf]
      %v285 = vld [vmem:[%s274 + $0x8] sm:$0xf]
      %v286 = vld [vmem:[%s274 + $0xc] sm:$0xf]
      %v287 = vld [vmem:[%s1] sm:$0xff]
      %v288 = vld [vmem:[%s1 + $0x8] sm:$0xff]
      %v289 = vld [vmem:[%s1 + $0x10] sm:$0xff]
      %v290 = vld [vmem:[%s1 + $0x18] sm:$0xff]
      %v291 = vld [vmem:[%s1 + $0x20] sm:$0x11]
      %v292 = vld [vmem:[%s2] sm:$0x3]
      %v294 = vperm.slane %v292, 0
      %v295 = vperm.slane %v292, 1
      %v302 = vunpack.c.l.b16 %v283
      %v303 = vunpack.c.l.b16 %v284
      %v304 = vunpack.c.l.b16 %v285
      %v305 = vunpack.c.l.b16 %v286
      %v306 = vpack.c.b16 %v303, %v302
      %v307 = vpack.c.b16 %v305, %v304
      %v313 = vunpack.c.l.b16 %v287
      %v314 = vunpack.c.h.b16 %v287
      %v315 = vunpack.c.l.b16 %v288
      %v316 = vunpack.c.h.b16 %v288
      %v317 = vunpack.c.l.b16 %v289
      %v318 = vunpack.c.h.b16 %v289
      %v319 = vunpack.c.l.b16 %v290
      %v320 = vunpack.c.h.b16 %v290
      %v321 = vunpack.c.l.b16 %v291
      %v322 = vunpack.c.h.b16 %v291
      %v323 = vpack.c.b16 %v315, %v313
      %v324 = vpack.c.b16 %v316, %v314
      %v325 = vpack.c.b16 %v319, %v317
      %v326 = vpack.c.b16 %v320, %v318
      %v327 = vpack.c.b16 %v321, %v321
      %v328 = vpack.c.b16 %v322, %v322
      %vm333 = vcmask 269312
      %v335 = vsel %vm333, %v306, 0
      %v338 = vsel %vm333, %v307, 0
      %vm340 = vcmask 1040384
      %v341 = vsel 0, 4294967295, 65535
      %v342 = vsel %vm340, %v341, 0
      %v344 = vand.u32 %v327, %v342
      %v347 = vand.u32 %v328, %v342
      %349 = vmatpush.bf16.msra.mxu0 0
      %350 = vmatpush.bf16.msra.mxu0 0
      %351 = vmatpush.bf16.msra.mxu0 0
      %352 = vmatpush.bf16.msra.mxu0 0
      %353 = vmatpush.bf16.msra.mxu0 0
      %354 = vmatpush.bf16.msra.mxu0 %v344
      %355 = vmatpush.bf16.msra.mxu0 %v325
      %356 = vmatpush.bf16.msra.mxu0 %v323
      %357 = vmatmul.bf16.gmra.mxu0 %v335
      %v358 = vpop.f32.mrf.mxu0
      %v359 = vadd.f32 %v294, %v358
      %v360 = vpop.f32.mrf.mxu0
      %v361 = vadd.f32 %v294, %v360
      %362 = vmatmul.bf16.gmra.mxu0 %v338
      %v363 = vpop.f32.mrf.mxu0
      %v364 = vadd.f32 %v294, %v363
      %v365 = vpop.f32.mrf.mxu0
      %v366 = vadd.f32 %v294, %v365
      %367 = vdwg.mxu0
      %368 = vmatpush.bf16.msra.mxu0 0
      %369 = vmatpush.bf16.msra.mxu0 0
      %370 = vmatpush.bf16.msra.mxu0 0
      %371 = vmatpush.bf16.msra.mxu0 0
      %372 = vmatpush.bf16.msra.mxu0 0
      %373 = vmatpush.bf16.msra.mxu0 %v347
      %374 = vmatpush.bf16.msra.mxu0 %v326
      %375 = vmatpush.bf16.msra.mxu0 %v324
      %376 = vmatmul.bf16.gmra.mxu0 %v335
      %v377 = vpop.f32.mrf.mxu0
      %v378 = vadd.f32 %v295, %v377
      %v379 = vpop.f32.mrf.mxu0
      %v380 = vadd.f32 %v295, %v379
      %381 = vmatmul.bf16.gmra.mxu0 %v338
      %v382 = vpop.f32.mrf.mxu0
      %v383 = vadd.f32 %v295, %v382
      %v384 = vpop.f32.mrf.mxu0
      %v385 = vadd.f32 %v295, %v384
      %386 = vdwg.mxu0
      %v387 = vmax.f32 %v359, 0.0
      %v388 = vmax.f32 %v378, 0.0
      %v389 = vmax.f32 %v361, 0.0
      %v390 = vmax.f32 %v380, 0.0
      %v391 = vmax.f32 %v364, 0.0
      %v392 = vmax.f32 %v383, 0.0
      %v393 = vmax.f32 %v366, 0.0
      %v394 = vmax.f32 %v385, 0.0
      %v395 = vpack.c.bf16 %v389, %v387
      %v396 = vpack.c.bf16 %v390, %v388
      %v397 = vpack.c.bf16 %v393, %v391
      %v398 = vpack.c.bf16 %v394, %v392
      %v399 = vld [vmem:[%s3] sm:$0xff]
      %v400 = vld [vmem:[%s3 + $0x8] sm:$0xff]
      %v401 = vld [vmem:[%s3 + $0x10] sm:$0xff]
      %v402 = vld [vmem:[%s3 + $0x18] sm:$0xff]
      %v403 = vld [vmem:[%s3 + $0x20] sm:$0xff]
      %v404 = vld [vmem:[%s3 + $0x28] sm:$0xff]
      %v405 = vld [vmem:[%s3 + $0x30] sm:$0xff]
      %v406 = vld [vmem:[%s3 + $0x38] sm:$0xff]
      %v407 = vld [vmem:[%s3 + $0x40] sm:$0xff]
      %v408 = vld [vmem:[%s3 + $0x48] sm:$0xff]
      %v409 = vld [vmem:[%s3 + $0x50] sm:$0xff]
      %v410 = vld [vmem:[%s3 + $0x58] sm:$0xff]
      %v411 = vld [vmem:[%s3 + $0x60] sm:$0xff]
      %v412 = vld [vmem:[%s3 + $0x68] sm:$0xff]
      %v413 = vld [vmem:[%s3 + $0x70] sm:$0xff]
      %v414 = vld [vmem:[%s3 + $0x78] sm:$0xff]
      %v415 = vld [vmem:[%s3 + $0x80] sm:$0xff]
      %v416 = vld [vmem:[%s3 + $0x88] sm:$0xff]
      %v417 = vld [vmem:[%s3 + $0x90] sm:$0xff]
      %v418 = vld [vmem:[%s3 + $0x98] sm:$0xff]
      %v419 = vld [vmem:[%s3 + $0xa0] sm:$0xff]
      %v420 = vld [vmem:[%s3 + $0xa8] sm:$0xff]
      %v421 = vld [vmem:[%s3 + $0xb0] sm:$0xff]
      %v422 = vld [vmem:[%s3 + $0xb8] sm:$0xff]
      %v423 = vld [vmem:[%s3 + $0xc0] sm:$0xff]
      %v424 = vld [vmem:[%s3 + $0xc8] sm:$0xff]
      %v425 = vld [vmem:[%s3 + $0xd0] sm:$0xff]
      %v426 = vld [vmem:[%s3 + $0xd8] sm:$0xff]
      %v427 = vld [vmem:[%s3 + $0xe0] sm:$0xff]
      %v428 = vld [vmem:[%s3 + $0xe8] sm:$0xff]
      %v429 = vld [vmem:[%s3 + $0xf0] sm:$0xff]
      %v430 = vld [vmem:[%s3 + $0xf8] sm:$0xff]
      %v431 = vld [vmem:[%s4] sm:$0x3]
      %v433 = vperm.slane %v431, 0
      %v434 = vperm.slane %v431, 1
      %v469 = vunpack.c.l.b16 %v399
      %v470 = vunpack.c.h.b16 %v399
      %v471 = vunpack.c.l.b16 %v400
      %v472 = vunpack.c.h.b16 %v400
      %v473 = vunpack.c.l.b16 %v401
      %v474 = vunpack.c.h.b16 %v401
      %v475 = vunpack.c.l.b16 %v402
      %v476 = vunpack.c.h.b16 %v402
      %v477 = vunpack.c.l.b16 %v403
      %v478 = vunpack.c.h.b16 %v403
      %v479 = vunpack.c.l.b16 %v404
      %v480 = vunpack.c.h.b16 %v404
      %v481 = vunpack.c.l.b16 %v405
      %v482 = vunpack.c.h.b16 %v405
      %v483 = vunpack.c.l.b16 %v406
      %v484 = vunpack.c.h.b16 %v406
      %v485 = vunpack.c.l.b16 %v407
      %v486 = vunpack.c.h.b16 %v407
      %v487 = vunpack.c.l.b16 %v408
      %v488 = vunpack.c.h.b16 %v408
      %v489 = vunpack.c.l.b16 %v409
      %v490 = vunpack.c.h.b16 %v409
      %v491 = vunpack.c.l.b16 %v410
      %v492 = vunpack.c.h.b16 %v410
      %v493 = vunpack.c.l.b16 %v411
      %v494 = vunpack.c.h.b16 %v411
      %v495 = vunpack.c.l.b16 %v412
      %v496 = vunpack.c.h.b16 %v412
      %v497 = vunpack.c.l.b16 %v413
      %v498 = vunpack.c.h.b16 %v413
      %v499 = vunpack.c.l.b16 %v414
      %v500 = vunpack.c.h.b16 %v414
      %v501 = vunpack.c.l.b16 %v415
      %v502 = vunpack.c.h.b16 %v415
      %v503 = vunpack.c.l.b16 %v416
      %v504 = vunpack.c.h.b16 %v416
      %v505 = vunpack.c.l.b16 %v417
      %v506 = vunpack.c.h.b16 %v417
      %v507 = vunpack.c.l.b16 %v418
      %v508 = vunpack.c.h.b16 %v418
      %v509 = vunpack.c.l.b16 %v419
      %v510 = vunpack.c.h.b16 %v419
      %v511 = vunpack.c.l.b16 %v420
      %v512 = vunpack.c.h.b16 %v420
      %v513 = vunpack.c.l.b16 %v421
      %v514 = vunpack.c.h.b16 %v421
      %v515 = vunpack.c.l.b16 %v422
      %v516 = vunpack.c.h.b16 %v422
      %v517 = vunpack.c.l.b16 %v423
      %v518 = vunpack.c.h.b16 %v423
      %v519 = vunpack.c.l.b16 %v424
      %v520 = vunpack.c.h.b16 %v424
      %v521 = vunpack.c.l.b16 %v425
      %v522 = vunpack.c.h.b16 %v425
      %v523 = vunpack.c.l.b16 %v426
      %v524 = vunpack.c.h.b16 %v426
      %v525 = vunpack.c.l.b16 %v427
      %v526 = vunpack.c.h.b16 %v427
      %v527 = vunpack.c.l.b16 %v428
      %v528 = vunpack.c.h.b16 %v428
      %v529 = vunpack.c.l.b16 %v429
      %v530 = vunpack.c.h.b16 %v429
      %v531 = vunpack.c.l.b16 %v430
      %v532 = vunpack.c.h.b16 %v430
      %v533 = vpack.c.b16 %v471, %v469
      %v534 = vpack.c.b16 %v472, %v470
      %v535 = vpack.c.b16 %v475, %v473
      %v536 = vpack.c.b16 %v476, %v474
      %v537 = vpack.c.b16 %v479, %v477
      %v538 = vpack.c.b16 %v480, %v478
      %v539 = vpack.c.b16 %v483, %v481
      %v540 = vpack.c.b16 %v484, %v482
      %v541 = vpack.c.b16 %v487, %v485
      %v542 = vpack.c.b16 %v488, %v486
      %v543 = vpack.c.b16 %v491, %v489
      %v544 = vpack.c.b16 %v492, %v490
      %v545 = vpack.c.b16 %v495, %v493
      %v546 = vpack.c.b16 %v496, %v494
      %v547 = vpack.c.b16 %v499, %v497
      %v548 = vpack.c.b16 %v500, %v498
      %v549 = vpack.c.b16 %v503, %v501
      %v550 = vpack.c.b16 %v504, %v502
      %v551 = vpack.c.b16 %v507, %v505
      %v552 = vpack.c.b16 %v508, %v506
      %v553 = vpack.c.b16 %v511, %v509
      %v554 = vpack.c.b16 %v512, %v510
      %v555 = vpack.c.b16 %v515, %v513
      %v556 = vpack.c.b16 %v516, %v514
      %v557 = vpack.c.b16 %v519, %v517
      %v558 = vpack.c.b16 %v520, %v518
      %v559 = vpack.c.b16 %v523, %v521
      %v560 = vpack.c.b16 %v524, %v522
      %v561 = vpack.c.b16 %v527, %v525
      %v562 = vpack.c.b16 %v528, %v526
      %v563 = vpack.c.b16 %v531, %v529
      %v564 = vpack.c.b16 %v532, %v530
      %597 = vmatpush.bf16.msra.mxu0 %v547
      %598 = vmatpush.bf16.msra.mxu0 %v545
      %599 = vmatpush.bf16.msra.mxu0 %v543
      %600 = vmatpush.bf16.msra.mxu0 %v541
      %601 = vmatpush.bf16.msra.mxu0 %v539
      %602 = vmatpush.bf16.msra.mxu0 %v537
      %603 = vmatpush.bf16.msra.mxu0 %v535
      %604 = vmatpush.bf16.msra.mxu0 %v533
      %605 = vmatmul.bf16.gmra.mxu0 %v395
      %v606 = vpop.f32.mrf.mxu0
      %v607 = vadd.f32 %v433, %v606
      %v608 = vpop.f32.mrf.mxu0
      %v609 = vadd.f32 %v433, %v608
      %610 = vmatmul.bf16.gmra.mxu0 %v397
      %v611 = vpop.f32.mrf.mxu0
      %v612 = vadd.f32 %v433, %v611
      %v613 = vpop.f32.mrf.mxu0
      %v614 = vadd.f32 %v433, %v613
      %615 = vdwg.mxu0
      %616 = vmatpush.bf16.msra.mxu0 %v563
      %617 = vmatpush.bf16.msra.mxu0 %v561
      %618 = vmatpush.bf16.msra.mxu0 %v559
      %619 = vmatpush.bf16.msra.mxu0 %v557
      %620 = vmatpush.bf16.msra.mxu0 %v555
      %621 = vmatpush.bf16.msra.mxu0 %v553
      %622 = vmatpush.bf16.msra.mxu0 %v551
      %623 = vmatpush.bf16.msra.mxu0 %v549
      %624 = vmatmul.bf16.gmra.mxu0 %v396
      %v625 = vpop.f32.mrf.mxu0
      %v626 = vadd.f32 %v607, %v625
      %v627 = vpop.f32.mrf.mxu0
      %v628 = vadd.f32 %v609, %v627
      %629 = vmatmul.bf16.gmra.mxu0 %v398
      %v630 = vpop.f32.mrf.mxu0
      %v631 = vadd.f32 %v612, %v630
      %v632 = vpop.f32.mrf.mxu0
      %v633 = vadd.f32 %v614, %v632
      %634 = vdwg.mxu0
      %635 = vmatpush.bf16.msra.mxu0 %v548
      %636 = vmatpush.bf16.msra.mxu0 %v546
      %637 = vmatpush.bf16.msra.mxu0 %v544
      %638 = vmatpush.bf16.msra.mxu0 %v542
      %639 = vmatpush.bf16.msra.mxu0 %v540
      %640 = vmatpush.bf16.msra.mxu0 %v538
      %641 = vmatpush.bf16.msra.mxu0 %v536
      %642 = vmatpush.bf16.msra.mxu0 %v534
      %643 = vmatmul.bf16.gmra.mxu0 %v395
      %v644 = vpop.f32.mrf.mxu0
      %v645 = vadd.f32 %v434, %v644
      %v646 = vpop.f32.mrf.mxu0
      %v647 = vadd.f32 %v434, %v646
      %648 = vmatmul.bf16.gmra.mxu0 %v397
      %v649 = vpop.f32.mrf.mxu0
      %v650 = vadd.f32 %v434, %v649
      %v651 = vpop.f32.mrf.mxu0
      %v652 = vadd.f32 %v434, %v651
      %653 = vdwg.mxu0
      %654 = vmatpush.bf16.msra.mxu0 %v564
      %655 = vmatpush.bf16.msra.mxu0 %v562
      %656 = vmatpush.bf16.msra.mxu0 %v560
      %657 = vmatpush.bf16.msra.mxu0 %v558
      %658 = vmatpush.bf16.msra.mxu0 %v556
      %659 = vmatpush.bf16.msra.mxu0 %v554
      %660 = vmatpush.bf16.msra.mxu0 %v552
      %661 = vmatpush.bf16.msra.mxu0 %v550
      %662 = vmatmul.bf16.gmra.mxu0 %v396
      %v663 = vpop.f32.mrf.mxu0
      %v664 = vadd.f32 %v645, %v663
      %v665 = vpop.f32.mrf.mxu0
      %v666 = vadd.f32 %v647, %v665
      %667 = vmatmul.bf16.gmra.mxu0 %v398
      %v668 = vpop.f32.mrf.mxu0
      %v669 = vadd.f32 %v650, %v668
      %v670 = vpop.f32.mrf.mxu0
      %v671 = vadd.f32 %v652, %v670
      %672 = vdwg.mxu0
      %v673 = vmax.f32 %v626, 0.0
      %v674 = vmax.f32 %v664, 0.0
      %v675 = vmax.f32 %v628, 0.0
      %v676 = vmax.f32 %v666, 0.0
      %v677 = vmax.f32 %v631, 0.0
      %v678 = vmax.f32 %v669, 0.0
      %v679 = vmax.f32 %v633, 0.0
      %v680 = vmax.f32 %v671, 0.0
      %v681 = vpack.c.bf16 %v675, %v673
      %v682 = vpack.c.bf16 %v676, %v674
      %v683 = vpack.c.bf16 %v679, %v677
      %v684 = vpack.c.bf16 %v680, %v678
      %v685 = vld [vmem:[%s5] sm:$0xf]
      %v686 = vld [vmem:[%s5 + $0x4] sm:$0xf]
      %v687 = vld [vmem:[%s5 + $0x8] sm:$0xf]
      %v688 = vld [vmem:[%s5 + $0xc] sm:$0xf]
      %v689 = vld [vmem:[%s5 + $0x10] sm:$0xf]
      %v690 = vld [vmem:[%s5 + $0x14] sm:$0xf]
      %v691 = vld [vmem:[%s5 + $0x18] sm:$0xf]
      %v692 = vld [vmem:[%s5 + $0x1c] sm:$0xf]
      %v693 = vld [vmem:[%s5 + $0x20] sm:$0xf]
      %v694 = vld [vmem:[%s5 + $0x24] sm:$0xf]
      %v695 = vld [vmem:[%s5 + $0x28] sm:$0xf]
      %v696 = vld [vmem:[%s5 + $0x2c] sm:$0xf]
      %v697 = vld [vmem:[%s5 + $0x30] sm:$0xf]
      %v698 = vld [vmem:[%s5 + $0x34] sm:$0xf]
      %v699 = vld [vmem:[%s5 + $0x38] sm:$0xf]
      %v700 = vld [vmem:[%s5 + $0x3c] sm:$0xf]
      %v701 = vld [vmem:[%s5 + $0x40] sm:$0xf]
      %v702 = vld [vmem:[%s5 + $0x44] sm:$0xf]
      %v703 = vld [vmem:[%s5 + $0x48] sm:$0xf]
      %v704 = vld [vmem:[%s5 + $0x4c] sm:$0xf]
      %v705 = vld [vmem:[%s5 + $0x50] sm:$0xf]
      %v706 = vld [vmem:[%s5 + $0x54] sm:$0xf]
      %v707 = vld [vmem:[%s5 + $0x58] sm:$0xf]
      %v708 = vld [vmem:[%s5 + $0x5c] sm:$0xf]
      %v709 = vld [vmem:[%s5 + $0x60] sm:$0xf]
      %v710 = vld [vmem:[%s5 + $0x64] sm:$0xf]
      %v711 = vld [vmem:[%s5 + $0x68] sm:$0xf]
      %v712 = vld [vmem:[%s5 + $0x6c] sm:$0xf]
      %v713 = vld [vmem:[%s5 + $0x70] sm:$0xf]
      %v714 = vld [vmem:[%s5 + $0x74] sm:$0xf]
      %v715 = vld [vmem:[%s5 + $0x78] sm:$0xf]
      %v716 = vld [vmem:[%s5 + $0x7c] sm:$0xf]
      %v717 = vld [vmem:[%s6] sm:$0x1]
      %v719 = vperm.slane %v717, 0
      %v753 = vunpack.c.l.b16 %v685
      %v754 = vunpack.c.l.b16 %v686
      %v755 = vunpack.c.l.b16 %v687
      %v756 = vunpack.c.l.b16 %v688
      %v757 = vunpack.c.l.b16 %v689
      %v758 = vunpack.c.l.b16 %v690
      %v759 = vunpack.c.l.b16 %v691
      %v760 = vunpack.c.l.b16 %v692
      %v761 = vunpack.c.l.b16 %v693
      %v762 = vunpack.c.l.b16 %v694
      %v763 = vunpack.c.l.b16 %v695
      %v764 = vunpack.c.l.b16 %v696
      %v765 = vunpack.c.l.b16 %v697
      %v766 = vunpack.c.l.b16 %v698
      %v767 = vunpack.c.l.b16 %v699
      %v768 = vunpack.c.l.b16 %v700
      %v769 = vunpack.c.l.b16 %v701
      %v770 = vunpack.c.l.b16 %v702
      %v771 = vunpack.c.l.b16 %v703
      %v772 = vunpack.c.l.b16 %v704
      %v773 = vunpack.c.l.b16 %v705
      %v774 = vunpack.c.l.b16 %v706
      %v775 = vunpack.c.l.b16 %v707
      %v776 = vunpack.c.l.b16 %v708
      %v777 = vunpack.c.l.b16 %v709
      %v778 = vunpack.c.l.b16 %v710
      %v779 = vunpack.c.l.b16 %v711
      %v780 = vunpack.c.l.b16 %v712
      %v781 = vunpack.c.l.b16 %v713
      %v782 = vunpack.c.l.b16 %v714
      %v783 = vunpack.c.l.b16 %v715
      %v784 = vunpack.c.l.b16 %v716
      %v785 = vpack.c.b16 %v754, %v753
      %v786 = vpack.c.b16 %v756, %v755
      %v787 = vpack.c.b16 %v758, %v757
      %v788 = vpack.c.b16 %v760, %v759
      %v789 = vpack.c.b16 %v762, %v761
      %v790 = vpack.c.b16 %v764, %v763
      %v791 = vpack.c.b16 %v766, %v765
      %v792 = vpack.c.b16 %v768, %v767
      %v793 = vpack.c.b16 %v770, %v769
      %v794 = vpack.c.b16 %v772, %v771
      %v795 = vpack.c.b16 %v774, %v773
      %v796 = vpack.c.b16 %v776, %v775
      %v797 = vpack.c.b16 %v778, %v777
      %v798 = vpack.c.b16 %v780, %v779
      %v799 = vpack.c.b16 %v782, %v781
      %v800 = vpack.c.b16 %v784, %v783
      %817 = vmatpush.bf16.msra.mxu0 %v792
      %818 = vmatpush.bf16.msra.mxu0 %v791
      %819 = vmatpush.bf16.msra.mxu0 %v790
      %820 = vmatpush.bf16.msra.mxu0 %v789
      %821 = vmatpush.bf16.msra.mxu0 %v788
      %822 = vmatpush.bf16.msra.mxu0 %v787
      %823 = vmatpush.bf16.msra.mxu0 %v786
      %824 = vmatpush.bf16.msra.mxu0 %v785
      %825 = vmatmul.bf16.gmra.mxu0 %v681
      %v826 = vpop.f32.mrf.mxu0
      %v827 = vadd.f32 %v719, %v826
      %v828 = vpop.f32.mrf.mxu0
      %v829 = vadd.f32 %v719, %v828
      %830 = vmatmul.bf16.gmra.mxu0 %v683
      %v831 = vpop.f32.mrf.mxu0
      %v832 = vadd.f32 %v719, %v831
      %v833 = vpop.f32.mrf.mxu0
      %v834 = vadd.f32 %v719, %v833
      %835 = vdwg.mxu0
      %836 = vmatpush.bf16.msra.mxu0 %v800
      %837 = vmatpush.bf16.msra.mxu0 %v799
      %838 = vmatpush.bf16.msra.mxu0 %v798
      %839 = vmatpush.bf16.msra.mxu0 %v797
      %840 = vmatpush.bf16.msra.mxu0 %v796
      %841 = vmatpush.bf16.msra.mxu0 %v795
      %842 = vmatpush.bf16.msra.mxu0 %v794
      %843 = vmatpush.bf16.msra.mxu0 %v793
      %844 = vmatmul.bf16.gmra.mxu0 %v682
      %v845 = vpop.f32.mrf.mxu0
      %v846 = vadd.f32 %v827, %v845
      %v847 = vpop.f32.mrf.mxu0
      %v848 = vadd.f32 %v829, %v847
      %849 = vmatmul.bf16.gmra.mxu0 %v684
      %v850 = vpop.f32.mrf.mxu0
      %v851 = vadd.f32 %v832, %v850
      %v852 = vpop.f32.mrf.mxu0
      %v853 = vadd.f32 %v834, %v852
      %854 = vdwg.mxu0
      %vm855 = vcmask 64512
      %856 = vst.msk [vmem:[%s280] sm:$0xff] %vm855, %v846
      %857 = vst.msk [vmem:[%s280 + $0x8] sm:$0xff] %vm855, %v848
      %858 = vst.msk [vmem:[%s280 + $0x10] sm:$0xff] %vm855, %v851
      %859 = vst.msk [vmem:[%s280 + $0x18] sm:$0xff] %vm855, %v853
      %s860 = smul.u32 4, %s18
      %p861 = scmp.lt.s32.totalorder %s860, 7
      %s862 = scalar_select %p861, %s860, 7
      %s863 = smul.addr %s862, 8
      %s864 = scalar_lea.vmem %s7, %s863
      // Predicated region
      $region49: #{mlp_regressor_forward.1} parent=47 // pred_check
        %p865 = pneg %p188
      $region50: #{mlp_regressor_forward.1} parent=47 // pred_check_branch
        %867 = sbr.rel (%p865) target = $region52
      $region51: #{mlp_regressor_forward.1} parent=47 // pred_region
        %s868 = smul.u32 4, %s18
      $region52: #{mlp_regressor_forward.1} parent=47 // pred_fallthru
        _
    $region48: #{mlp_regressor_forward.1} parent=5 // pred_fallthru
      _
    %p869 = scmp.le.s32.totalorder 2, %s13
    // Predicated region
    $region53: #{mlp_regressor_forward.1} parent=5 // pred_check
      %p870 = pneg %p869
    $region54: #{mlp_regressor_forward.1} parent=5 // pred_check_branch
      %872 = sbr.rel (%p870) target = $region56
    $region55: #{mlp_regressor_forward.1} parent=5 // pred_region
      %s873 = ssub.s32 %s13, 2
      // Predicated region
      $region57: #{mlp_regressor_forward.1} parent=55 // pred_check
        %p874 = pneg %p194
      $region58: #{mlp_regressor_forward.1} parent=55 // pred_check_branch
        %876 = sbr.rel (%p874) target = $region60
      $region59: #{mlp_regressor_forward.1} parent=55 // pred_region
        %s877 = smul.u32 4, %s19
        %p878 = scmp.lt.s32.totalorder %s877, 7
        %s879 = scalar_select %p878, %s877, 7
        %s880 = smul.addr %s879, 8
        %s881 = scalar_lea.vmem %s7, %s880
      $region60: #{mlp_regressor_forward.1} parent=55 // pred_fallthru
        _
    $region56: #{mlp_regressor_forward.1} parent=5 // pred_fallthru
      _
  $region6: #{mlp_regressor_forward.1} parent=0 // loop_footer
    %s17 = sadd.s32 1, %s13
  $region7: #{mlp_regressor_forward.1} parent=0 // loop_footer_branch
    %12 = sbr.rel target = $region3
  $region8: #{mlp_regressor_forward.1} parent=0 // loop_exit
    _

</llo_original>
